<compile_context>
chip_gen: v7x
topology: tpu7x:2x2x1
jax: 0.10.0
libtpu: 0.0.40
codegen_flags: <defaults>
</compile_context>

<pallas_src>
import jax
import jax.numpy as jnp
from jax.experimental import pallas as pl
from jax.experimental.pallas import tpu as pltpu


def _attention_gate_kernel(x_ref, g_ref, wt_ref, wp_ref, aux_ref, out_ref):
    # x_ref  : (Cin, T)     pixel tile of x (pixels on lanes), input dtype
    # g_ref  : (Cg,  T)     pixel tile of g, input dtype
    # wt_ref : (Ci, Cin)    theta_x 1x1-conv weight (input dtype)
    # wp_ref : (Ci, Cg)     phi_g   1x1-conv weight (input dtype)
    # aux_ref: (Ci, 3) f32  col0 = theta_b + phi_b, col1 = psi weight, [0,2] = psi bias
    # out_ref: (Cin, T)
    aux = aux_ref[...]                 # already f32
    bias_tp = aux[:, 0:1]              # (Ci, 1)
    w_psi = aux[:, 1:2]                # (Ci, 1)
    b_psi = aux[0:1, 2:3]              # (1, 1)

    # Native-dtype MXU operands (bf16 stays bf16), f32 accumulation.
    s = (jnp.dot(wt_ref[...], x_ref[...], preferred_element_type=jnp.float32)
         + jnp.dot(wp_ref[...], g_ref[...], preferred_element_type=jnp.float32)
         + bias_tp)                                    # (Ci, T) f32
    a = jnp.maximum(s, 0.0)                            # ReLU

    # psi = sigmoid(psi_w . a + psi_b): single output channel.
    if a.shape[0] >= 256:
        # Large Ci: use the (idle) MXU instead of a big cross-sublane reduce.
        psi_logit = jnp.dot(w_psi.T, a, preferred_element_type=jnp.float32) + b_psi
    else:
        # Small/medium Ci: VPU multiply + sublane reduce (XLU slot is free).
        psi_logit = jnp.sum(a * w_psi, axis=0, keepdims=True) + b_psi   # (1, T)
    psi = jax.nn.sigmoid(psi_logit)                    # (1, T) f32

    # Epilogue: re-read x here (no f32 copy of x kept alive across the matmul
    # section). Multiply in f32 (v5e has no bf16 VPU; matches the f32 ref).
    out_ref[...] = (x_ref[...].astype(jnp.float32) * psi).astype(out_ref.dtype)


def _round_up(v, m):
    return ((v + m - 1) // m) * m


def _vmem_capacity_bytes():
    try:
        return int(pltpu.get_tpu_info().vmem_capacity_bytes)
    except Exception:
        return 64 * 1024 * 1024   # conservative fallback: v7x per-TensorCore VMEM


def attention_gate(x_nchw, g_nchw, params, *, tile_pix=None):
    """x_nchw: (B, Cin, H, W); g_nchw: (B, Cg, H, W). Returns (B, Cin, H, W)."""
    B, Cin, H, W = x_nchw.shape
    Bg, Cg, Hg, Wg = g_nchw.shape
    assert B == Bg and (H, W) == (Hg, Wg), \
        "x and g must share batch/spatial dims (as in the PyTorch add)"
    Ci = params["theta_w"].shape[0]
    HW = H * W

    # Free reshapes (no transpose, no copy): pixels land on the lane axis.
    x_flat = x_nchw.reshape(B, Cin, HW)
    g_flat = g_nchw.reshape(B, Cg, HW)

    # --- tiny parameter tensors, prepared once in the wrapper ----------------
    compute_dtype = x_nchw.dtype          # MXU operands stay in the input dtype
    f32 = jnp.float32
    Ci_pad = _round_up(Ci, 8)             # sublane-align the inter-channel dim

    def pad_rows(w):
        if Ci_pad == Ci:
            return w
        return jnp.concatenate(
            [w, jnp.zeros((Ci_pad - Ci,) + w.shape[1:], w.dtype)], axis=0)

    wt = pad_rows(params["theta_w"]).astype(compute_dtype)            # (Ci_pad, Cin)
    wp = pad_rows(params["phi_w"]).astype(g_nchw.dtype)               # (Ci_pad, Cg)
    bias_tp = pad_rows((params["theta_b"] + params["phi_b"])
                       .astype(f32).reshape(Ci, 1))                   # (Ci_pad, 1)
    w_psi = pad_rows(params["psi_w"].astype(f32).reshape(Ci, 1))      # (Ci_pad, 1)
    b_psi = jnp.zeros((Ci_pad, 1), f32).at[0, 0].set(
        params["psi_b"].astype(f32)[0])
    aux = jnp.concatenate([bias_tp, w_psi, b_psi], axis=1)            # (Ci_pad, 3)
    # Zero-padded rows contribute relu(0)*0 = 0 to psi -> numerically exact.

    # --- generation-aware tile / VMEM budgeting ------------------------------
    itemsize = jnp.dtype(x_nchw.dtype).itemsize
    g_itemsize = jnp.dtype(g_nchw.dtype).itemsize
    vmem_cap = _vmem_capacity_bytes()
    if vmem_cap >= 96 * 1024 * 1024:       # v5e / v6e: 128 MiB physical VMEM
        budget = 28 * 1024 * 1024
        base_limit = 64 * 1024 * 1024
    else:                                  # v7x: 64 MiB per TensorCore
        budget = 20 * 1024 * 1024
        base_limit = 48 * 1024 * 1024

    # VMEM bytes per pixel column:
    #   double-buffered pipelined I/O tiles (x in, out, g in)
    #   + in-kernel f32 temporaries (s, a: Ci_pad rows each; epilogue x: Cin rows).
    bytes_per_pix = ((2 * Cin * itemsize + Cg * g_itemsize) * 2
                     + (2 * Ci_pad + Cin) * 4)

    if tile_pix is None:
        tile_pix = min(budget // max(bytes_per_pix, 1), _round_up(HW, 128))
        tile_pix = max(128, (tile_pix // 128) * 128)
        # v7x shards the "parallel" grid axes over 2 TensorCores: guarantee at
        # least 2 grid steps so the second core is never idle (cheap on 1-TC
        # generations too: one extra ~0.35 us step).
        while B * pl.cdiv(HW, tile_pix) < 2 and tile_pix > 128:
            tile_pix = max(128, ((tile_pix // 2) // 128) * 128)
    assert tile_pix % 128 == 0

    # Never let the (clamped-up-to-128) tile outrun the VMEM limit.
    weights_bytes = 2 * (wt.size * wt.dtype.itemsize
                         + wp.size * wp.dtype.itemsize
                         + aux.size * 4)
    needed = tile_pix * bytes_per_pix + weights_bytes + 2 * 1024 * 1024
    vmem_limit = int(min(vmem_cap, max(base_limit, needed)))

    grid = (B, pl.cdiv(HW, tile_pix))
    full = lambda b, i: (0, 0)

    out_flat = pl.pallas_call(
        _attention_gate_kernel,
        out_shape=jax.ShapeDtypeStruct((B, Cin, HW), x_nchw.dtype),
        grid_spec=pltpu.PrefetchScalarGridSpec(
            num_scalar_prefetch=0,
            grid=grid,
            in_specs=[
                pl.BlockSpec((None, Cin, tile_pix), lambda b, i: (b, 0, i)),  # x tile
                pl.BlockSpec((None, Cg, tile_pix), lambda b, i: (b, 0, i)),   # g tile
                pl.BlockSpec((Ci_pad, Cin), full),                            # theta weight
                pl.BlockSpec((Ci_pad, Cg), full),                             # phi weight
                pl.BlockSpec((Ci_pad, 3), full),                              # fused biases + psi params
            ],
            out_specs=pl.BlockSpec((None, Cin, tile_pix), lambda b, i: (b, 0, i)),
        ),
        compiler_params=pltpu.CompilerParams(
            dimension_semantics=("parallel", "parallel"),
            vmem_limit_bytes=vmem_limit),
    )(x_flat, g_flat, wt, wp, aux)

    return out_flat.reshape(B, Cin, H, W)


def init_params(key, in_channels, gate_channels, inter_channels, dtype=jnp.float32):
    """Deterministic synthetic init (PyTorch Conv2d-style uniform fan-in bounds)."""
    ks = jax.random.split(key, 6)

    def conv_init(kw, kb, c_out, c_in):
        bound = 1.0 / jnp.sqrt(jnp.asarray(c_in, dtype))
        w = jax.random.uniform(kw, (c_out, c_in), dtype, -bound, bound)
        b = jax.random.uniform(kb, (c_out,), dtype, -bound, bound)
        return w, b

    theta_w, theta_b = conv_init(ks[0], ks[1], inter_channels, in_channels)
    phi_w, phi_b = conv_init(ks[2], ks[3], inter_channels, gate_channels)
    psi_w, psi_b = conv_init(ks[4], ks[5], 1, inter_channels)
    return dict(theta_w=theta_w, theta_b=theta_b,
                phi_w=phi_w, phi_b=phi_b,
                psi_w=psi_w, psi_b=psi_b)


def attention_gate_ref(x, g, params):
    """Pure-JAX reference (mirrors the PyTorch forward)."""
    def conv1x1(t, w, b):  # t: NCHW, w: (Cout, Cin)
        return jnp.einsum('bchw,oc->bohw', t, w) + b[None, :, None, None]

    theta_x = conv1x1(x, params["theta_w"], params["theta_b"])
    phi_g = conv1x1(g, params["phi_w"], params["phi_b"])
    add_xg = jnp.maximum(theta_x + phi_g, 0.0)
    psi = jax.nn.sigmoid(conv1x1(add_xg, params["psi_w"], params["psi_b"]))
    # bilinear interpolate to x spatial size with align_corners=True: identity here.
    return x * psi


if __name__ == "__main__":
    B, Cin, Cg, Ci, H, W = 2, 4, 4, 8, 16, 16
    key = jax.random.PRNGKey(0)
    kx, kg, kp = jax.random.split(key, 3)

    x = jax.random.normal(kx, (B, Cin, H, W), jnp.float32)
    g = jax.random.normal(kg, (B, Cg, H, W), jnp.float32)
    params = init_params(kp, Cin, Cg, Ci)

    # f32 path: exact against the f32 reference.
    out = attention_gate(x, g, params)
    out = jax.block_until_ready(out)
    ref = attention_gate_ref(x, g, params)
    assert out.shape == (B, Cin, H, W)
    assert jnp.allclose(out, ref, atol=1e-5, rtol=1e-5), "mismatch vs reference (f32)"

    # bf16 path: native bf16 MXU operands, f32 accumulation (loose tolerance).
    x_bf = x.astype(jnp.bfloat16)
    g_bf = g.astype(jnp.bfloat16)
    out_bf = jax.block_until_ready(attention_gate(x_bf, g_bf, params))
    ref_bf = attention_gate_ref(x_bf.astype(jnp.float32),
                                g_bf.astype(jnp.float32), params)
    assert jnp.allclose(out_bf.astype(jnp.float32), ref_bf, atol=6e-2, rtol=6e-2), \
        "mismatch vs reference (bf16)"

    print("KERNEL_OK")
</pallas_src>

<mosaic_0001>
module attributes {stable_mosaic.version = 11 : i64} {
  func.func @_attention_gate_kernel(%arg0: i32, %arg1: i32, %arg2: memref<1x4x256xf32, #tpu.memory_space<vmem>>, %arg3: memref<1x4x256xf32, #tpu.memory_space<vmem>>, %arg4: memref<8x4xf32, #tpu.memory_space<vmem>>, %arg5: memref<8x4xf32, #tpu.memory_space<vmem>>, %arg6: memref<8x3xf32, #tpu.memory_space<vmem>>, %arg7: memref<1x4x256xf32, #tpu.memory_space<vmem>>) attributes {dimension_semantics = [#tpu.dimension_semantics<parallel>, #tpu.dimension_semantics<parallel>], iteration_bounds = array<i64: 2, 1>, scalar_prefetch = 0 : i64, scratch_operands = 0 : i64, tpu.core_type = #tpu.core_type<tc>, window_params = [{transform_indices = @transform_0, window_bounds = array<i64: 1, 4, 256>}, {transform_indices = @transform_1, window_bounds = array<i64: 1, 4, 256>}, {pipeline_mode = #tpu.pipeline_mode<synchronous>, transform_indices = @transform_2, window_bounds = array<i64: 8, 4>}, {pipeline_mode = #tpu.pipeline_mode<synchronous>, transform_indices = @transform_3, window_bounds = array<i64: 8, 4>}, {pipeline_mode = #tpu.pipeline_mode<synchronous>, transform_indices = @transform_4, window_bounds = array<i64: 8, 3>}, {transform_indices = @transform_5, window_bounds = array<i64: 1, 4, 256>}]} {
    %c0 = arith.constant 0 : index
    %c0_0 = arith.constant 0 : index
    %0 = vector.load %arg6[%c0, %c0_0] : memref<8x3xf32, #tpu.memory_space<vmem>>, vector<8x3xf32>
    %1 = vector.extract_strided_slice %0 {offsets = [0, 0], sizes = [8, 1], strides = [1, 1]} : vector<8x3xf32> to vector<8x1xf32>
    %2 = vector.extract_strided_slice %0 {offsets = [0, 1], sizes = [8, 1], strides = [1, 1]} : vector<8x3xf32> to vector<8x1xf32>
    %3 = vector.extract_strided_slice %0 {offsets = [0, 2], sizes = [1, 1], strides = [1, 1]} : vector<8x3xf32> to vector<1x1xf32>
    %c0_1 = arith.constant 0 : index
    %c0_2 = arith.constant 0 : index
    %4 = vector.load %arg4[%c0_1, %c0_2] : memref<8x4xf32, #tpu.memory_space<vmem>>, vector<8x4xf32>
    %c0_3 = arith.constant 0 : index
    %c0_4 = arith.constant 0 : index
    %c0_5 = arith.constant 0 : index
    %5 = vector.load %arg2[%c0_3, %c0_4, %c0_5] : memref<1x4x256xf32, #tpu.memory_space<vmem>>, vector<1x4x256xf32>
    %6 = vector.shape_cast %5 : vector<1x4x256xf32> to vector<4x256xf32>
    %cst = arith.constant dense<0.000000e+00> : vector<8x256xf32>
    %7 = tpu.matmul %4, %6, %cst {dimension_numbers = #tpu.dot_dimension_numbers<[1], [0], [0], [1], [0, 0, 1, 1], [], []>} : vector<8x4xf32>, vector<4x256xf32>, vector<8x256xf32> -> vector<8x256xf32>
    %c0_6 = arith.constant 0 : index
    %c0_7 = arith.constant 0 : index
    %8 = vector.load %arg5[%c0_6, %c0_7] : memref<8x4xf32, #tpu.memory_space<vmem>>, vector<8x4xf32>
    %c0_8 = arith.constant 0 : index
    %c0_9 = arith.constant 0 : index
    %c0_10 = arith.constant 0 : index
    %9 = vector.load %arg3[%c0_8, %c0_9, %c0_10] : memref<1x4x256xf32, #tpu.memory_space<vmem>>, vector<1x4x256xf32>
    %10 = vector.shape_cast %9 : vector<1x4x256xf32> to vector<4x256xf32>
    %cst_11 = arith.constant dense<0.000000e+00> : vector<8x256xf32>
    %11 = tpu.matmul %8, %10, %cst_11 {dimension_numbers = #tpu.dot_dimension_numbers<[1], [0], [0], [1], [0, 0, 1, 1], [], []>} : vector<8x4xf32>, vector<4x256xf32>, vector<8x256xf32> -> vector<8x256xf32>
    %12 = arith.addf %7, %11 : vector<8x256xf32>
    %13 = vector.broadcast %1 : vector<8x1xf32> to vector<8x256xf32>
    %14 = arith.addf %12, %13 : vector<8x256xf32>
    %cst_12 = arith.constant 0.000000e+00 : f32
    %15 = vector.broadcast %cst_12 : f32 to vector<8x256xf32>
    %16 = arith.maximumf %14, %15 : vector<8x256xf32>
    %17 = vector.broadcast %2 : vector<8x1xf32> to vector<8x256xf32>
    %18 = arith.mulf %16, %17 : vector<8x256xf32>
    %cst_13 = arith.constant dense<0.000000e+00> : vector<256xf32>
    %19 = vector.multi_reduction <add>, %18, %cst_13 [0] : vector<8x256xf32> to vector<256xf32>
    %20 = vector.shape_cast %19 : vector<256xf32> to vector<1x256xf32>
    %21 = vector.broadcast %3 : vector<1x1xf32> to vector<1x256xf32>
    %22 = arith.addf %20, %21 : vector<1x256xf32>
    %23 = arith.negf %22 : vector<1x256xf32>
    %24 = math.exp %23 : vector<1x256xf32>
    %cst_14 = arith.constant 1.000000e+00 : f32
    %25 = vector.broadcast %cst_14 : f32 to vector<1x256xf32>
    %26 = arith.addf %25, %24 : vector<1x256xf32>
    %27 = arith.divf %25, %26 : vector<1x256xf32>
    %c0_15 = arith.constant 0 : index
    %c0_16 = arith.constant 0 : index
    %c0_17 = arith.constant 0 : index
    %28 = vector.load %arg2[%c0_15, %c0_16, %c0_17] : memref<1x4x256xf32, #tpu.memory_space<vmem>>, vector<1x4x256xf32>
    %29 = vector.shape_cast %28 : vector<1x4x256xf32> to vector<4x256xf32>
    %30 = vector.broadcast %27 : vector<1x256xf32> to vector<4x256xf32>
    %31 = arith.mulf %29, %30 : vector<4x256xf32>
    %c0_18 = arith.constant 0 : index
    %c0_19 = arith.constant 0 : index
    %c0_20 = arith.constant 0 : index
    %32 = vector.load %arg7[%c0_18, %c0_19, %c0_20] : memref<1x4x256xf32, #tpu.memory_space<vmem>>, vector<1x4x256xf32>
    %33 = vector.shape_cast %32 : vector<1x4x256xf32> to vector<4x256xf32>
    %34 = vector.shape_cast %31 : vector<4x256xf32> to vector<1x4x256xf32>
    tpu.vector_store %arg7[%c0_18, %c0_19, %c0_20], %34 {strides = array<i32>} : memref<1x4x256xf32, #tpu.memory_space<vmem>>, vector<1x4x256xf32>,
    return
  }
  func.func @transform_0(%arg0: i32, %arg1: i32) -> (i32, i32, i32) {
    %c0_i32 = arith.constant 0 : i32
    %c0_i32_0 = arith.constant 0 : i32
    return %arg0, %c0_i32, %arg1 : i32, i32, i32
  }
  func.func @transform_1(%arg0: i32, %arg1: i32) -> (i32, i32, i32) {
    %c0_i32 = arith.constant 0 : i32
    %c0_i32_0 = arith.constant 0 : i32
    return %arg0, %c0_i32, %arg1 : i32, i32, i32
  }
  func.func @transform_2(%arg0: i32, %arg1: i32) -> (i32, i32) {
    %c0_i32 = arith.constant 0 : i32
    %c0_i32_0 = arith.constant 0 : i32
    %c0_i32_1 = arith.constant 0 : i32
    return %c0_i32, %c0_i32_0 : i32, i32
  }
  func.func @transform_3(%arg0: i32, %arg1: i32) -> (i32, i32) {
    %c0_i32 = arith.constant 0 : i32
    %c0_i32_0 = arith.constant 0 : i32
    %c0_i32_1 = arith.constant 0 : i32
    return %c0_i32, %c0_i32_0 : i32, i32
  }
  func.func @transform_4(%arg0: i32, %arg1: i32) -> (i32, i32) {
    %c0_i32 = arith.constant 0 : i32
    %c0_i32_0 = arith.constant 0 : i32
    %c0_i32_1 = arith.constant 0 : i32
    return %c0_i32, %c0_i32_0 : i32, i32
  }
  func.func @transform_5(%arg0: i32, %arg1: i32) -> (i32, i32, i32) {
    %c0_i32 = arith.constant 0 : i32
    %c0_i32_0 = arith.constant 0 : i32
    return %arg0, %c0_i32, %arg1 : i32, i32, i32
  }
}

</mosaic_0001>

<llo_original>
// kernel: tpu_custom_call.1
$region0: #{tpu_custom_call.1}
  #allocation0 [shape = 'u32[]', space=smem, size = 0x4, offset = 0x4, fixed_abs, tag = 'smem constant byte address 0x4 - core index']
  #allocation1 [shape = 'u32[144,128]{1,0:T(1,128)}', space=vmem, size = 0x12000, scoped, tag = 'internal scratch']
  %s0 = inlined_call_operand.vmem [shape: f32[2,4,256], index: 0, kind: input, shape index: {}]
  %s1 = inlined_call_operand.vmem [shape: f32[2,4,256], index: 1, kind: input, shape index: {}]
  %s2 = inlined_call_operand.vmem [shape: f32[8,4], index: 2, kind: input, shape index: {}]
  %s3 = inlined_call_operand.vmem [shape: f32[8,4], index: 3, kind: input, shape index: {}]
  %s4 = inlined_call_operand.vmem [shape: f32[8,3], index: 4, kind: input, shape index: {}]
  %s5 = inlined_call_operand.hbm [shape: f32[2,4,256], index: 5, kind: output, shape index: {}]
  %s6 = sld [smem:[#allocation0]]
  $region53: #{tpu_custom_call.1} parent=0
    _
  %s8 = ssub.s32 1, %s6
  %s9 = scalar_select 0, %s8, %s6
  $region1: #{tpu_custom_call.1} parent=0
    #allocation2 [shape = 'u8[8192]{0}', space=vmem, size = 0x2000, scoped, tag = 'output window, operand 0']
    #allocation3 [shape = 's32[2]{0}', space=sflag, size = 0x8, scoped, tag = 'scoped memory for tpu_custom_call.1']
    %10 = vsyncpa [#allocation3], 0
    %s11 = scalar_lea.sflag [#allocation3], 1
    %12 = vsyncpa %s11, 0
    loop: start=0, step=1, limit=4
    $region2: #{tpu_custom_call.1} parent=1 // loop_pre_header
      _
    $region3: #{tpu_custom_call.1} parent=1 // loop_header
      %s14 = sphi 0, %s18
      %p15 = scmp.ge.s32.totalorder %s14, 4
      %s21 = sphi 0, %s33
      %s22 = sphi 0, %s29
      %s23 = sphi 0, %s21
      %s24 = sphi 0, %s22
      %s25 = sphi 0, %s23
      %s26 = sphi 0, %s24
      %s38 = sphi 0, %s40
      %s41 = sphi 0, %s38
      %s42 = sphi 0, %s41
      %s58 = sphi 0, %s42
      %s66 = sphi 0, %s68
      %s69 = sphi 0, %s66
      %s70 = sphi 0, %s69
      %s86 = sphi 0, %s70
      %s90 = sphi 0, %s90
      %s92 = sphi 0, %s90
      %s93 = sphi 0, %s92
      %s107 = sphi 0, %s93
      %s111 = sphi 0, %s111
      %s113 = sphi 0, %s111
      %s114 = sphi 0, %s113
      %s128 = sphi 0, %s114
      %s132 = sphi 0, %s132
      %s134 = sphi 0, %s132
      %s135 = sphi 0, %s134
      %s149 = sphi 0, %s135
      %s157 = sphi 0, %s159
      %s160 = sphi 0, %s157
      %s161 = sphi 0, %s160
      %s177 = sphi 0, %s161
    $region4: #{tpu_custom_call.1} parent=1 // loop_header_branch
      %17 = sbr.rel (%p15) target = $region8
    $region5: #{tpu_custom_call.1} parent=1 // loop_body
      %s19 = ssub.s32 %s14, 1
      %s20 = ssub.s32 %s14, 2
      %s27 = sadd.s32 1, %s22
      %p28 = scmp.ge.s32.totalorder %s27, 1
      %s29 = scalar_select %p28, 0, %s27
      %s30 = sadd.s32 1, %s21
      %s31 = scalar_select %p28, %s30, %s21
      %p32 = scmp.ge.s32.totalorder %s31, 2
      %s33 = scalar_select %p32, 0, %s31
      %s34 = ssub.s32 %s21, %s33
      %s35 = ssub.s32 %s22, %s29
      %s36 = sor.u32 %s34, %s35
      %p37 = scmp.eq.s32.totalorder %s36, 0
      %s39 = sadd.s32 %s38, 1
      %s40 = scalar_select %p37, %s38, %s39
      %p43 = pneg %p37
      %p44 = scmp.eq.s32.totalorder %s14, 1
      %p45 = por %p43, %p44
      %p46 = scmp.ne.s32.totalorder %s38, %s41
      %p47 = scmp.eq.s32.totalorder %s14, 0
      %p48 = por %p46, %p47
      %p49 = scmp.ne.s32.totalorder %s38, %s41
      %p50 = scmp.eq.s32.totalorder %s19, 1
      %p51 = por %p49, %p50
      %p52 = scmp.ne.s32.totalorder %s41, %s42
      %p53 = scmp.eq.s32.totalorder %s19, 0
      %p54 = por %p52, %p53
      %p55 = scmp.ne.s32.totalorder %s41, %s42
      %p56 = scmp.eq.s32.totalorder %s20, 1
      %p57 = por %p55, %p56
      %p59 = scmp.ne.s32.totalorder %s42, %s58
      %p60 = scmp.eq.s32.totalorder %s20, 0
      %p61 = por %p59, %p60
      %s62 = ssub.s32 %s21, %s33
      %s63 = ssub.s32 %s22, %s29
      %s64 = sor.u32 %s62, %s63
      %p65 = scmp.eq.s32.totalorder %s64, 0
      %s67 = sadd.s32 %s66, 1
      %s68 = scalar_select %p65, %s66, %s67
      %p71 = pneg %p65
      %p72 = scmp.eq.s32.totalorder %s14, 1
      %p73 = por %p71, %p72
      %p74 = scmp.ne.s32.totalorder %s66, %s69
      %p75 = scmp.eq.s32.totalorder %s14, 0
      %p76 = por %p74, %p75
      %p77 = scmp.ne.s32.totalorder %s66, %s69
      %p78 = scmp.eq.s32.totalorder %s19, 1
      %p79 = por %p77, %p78
      %p80 = scmp.ne.s32.totalorder %s69, %s70
      %p81 = scmp.eq.s32.totalorder %s19, 0
      %p82 = por %p80, %p81
      %p83 = scmp.ne.s32.totalorder %s69, %s70
      %p84 = scmp.eq.s32.totalorder %s20, 1
      %p85 = por %p83, %p84
      %p87 = scmp.ne.s32.totalorder %s70, %s86
      %p88 = scmp.eq.s32.totalorder %s20, 0
      %p89 = por %p87, %p88
      %s91 = sadd.s32 %s90, 1
      %p94 = scmp.eq.s32.totalorder %s14, 1
      %p95 = scmp.ne.s32.totalorder %s90, %s92
      %p96 = scmp.eq.s32.totalorder %s14, 0
      %p97 = por %p95, %p96
      %p98 = scmp.ne.s32.totalorder %s90, %s92
      %p99 = scmp.eq.s32.totalorder %s19, 1
      %p100 = por %p98, %p99
      %p101 = scmp.ne.s32.totalorder %s92, %s93
      %p102 = scmp.eq.s32.totalorder %s19, 0
      %p103 = por %p101, %p102
      %p104 = scmp.ne.s32.totalorder %s92, %s93
      %p105 = scmp.eq.s32.totalorder %s20, 1
      %p106 = por %p104, %p105
      %p108 = scmp.ne.s32.totalorder %s93, %s107
      %p109 = scmp.eq.s32.totalorder %s20, 0
      %p110 = por %p108, %p109
      %s112 = sadd.s32 %s111, 1
      %p115 = scmp.eq.s32.totalorder %s14, 1
      %p116 = scmp.ne.s32.totalorder %s111, %s113
      %p117 = scmp.eq.s32.totalorder %s14, 0
      %p118 = por %p116, %p117
      %p119 = scmp.ne.s32.totalorder %s111, %s113
      %p120 = scmp.eq.s32.totalorder %s19, 1
      %p121 = por %p119, %p120
      %p122 = scmp.ne.s32.totalorder %s113, %s114
      %p123 = scmp.eq.s32.totalorder %s19, 0
      %p124 = por %p122, %p123
      %p125 = scmp.ne.s32.totalorder %s113, %s114
      %p126 = scmp.eq.s32.totalorder %s20, 1
      %p127 = por %p125, %p126
      %p129 = scmp.ne.s32.totalorder %s114, %s128
      %p130 = scmp.eq.s32.totalorder %s20, 0
      %p131 = por %p129, %p130
      %s133 = sadd.s32 %s132, 1
      %p136 = scmp.eq.s32.totalorder %s14, 1
      %p137 = scmp.ne.s32.totalorder %s132, %s134
      %p138 = scmp.eq.s32.totalorder %s14, 0
      %p139 = por %p137, %p138
      %p140 = scmp.ne.s32.totalorder %s132, %s134
      %p141 = scmp.eq.s32.totalorder %s19, 1
      %p142 = por %p140, %p141
      %p143 = scmp.ne.s32.totalorder %s134, %s135
      %p144 = scmp.eq.s32.totalorder %s19, 0
      %p145 = por %p143, %p144
      %p146 = scmp.ne.s32.totalorder %s134, %s135
      %p147 = scmp.eq.s32.totalorder %s20, 1
      %p148 = por %p146, %p147
      %p150 = scmp.ne.s32.totalorder %s135, %s149
      %p151 = scmp.eq.s32.totalorder %s20, 0
      %p152 = por %p150, %p151
      %s153 = ssub.s32 %s21, %s33
      %s154 = ssub.s32 %s22, %s29
      %s155 = sor.u32 %s153, %s154
      %p156 = scmp.eq.s32.totalorder %s155, 0
      %s158 = sadd.s32 %s157, 1
      %s159 = scalar_select %p156, %s157, %s158
      %p162 = pneg %p156
      %p163 = scmp.eq.s32.totalorder %s14, 1
      %p164 = por %p162, %p163
      %p165 = scmp.ne.s32.totalorder %s157, %s160
      %p166 = scmp.eq.s32.totalorder %s14, 0
      %p167 = por %p165, %p166
      %p168 = scmp.ne.s32.totalorder %s157, %s160
      %p169 = scmp.eq.s32.totalorder %s19, 1
      %p170 = por %p168, %p169
      %p171 = scmp.ne.s32.totalorder %s160, %s161
      %p172 = scmp.eq.s32.totalorder %s19, 0
      %p173 = por %p171, %p172
      %p174 = scmp.ne.s32.totalorder %s160, %s161
      %p175 = scmp.eq.s32.totalorder %s20, 1
      %p176 = por %p174, %p175
      %p178 = scmp.ne.s32.totalorder %s161, %s177
      %p179 = scmp.eq.s32.totalorder %s20, 0
      %p180 = por %p178, %p179
      %p181 = scmp.le.s32.totalorder 1, %s14
      %p182 = scmp.lt.s32.totalorder %s14, 3
      %p183 = pnand %p181, %p182
      %p184 = pneg %p183
      // Predicated region
      $region9: #{tpu_custom_call.1} parent=5 // pred_check
        _
      $region10: #{tpu_custom_call.1} parent=5 // pred_check_branch
        %186 = sbr.rel (%p183) target = $region12
      $region11: #{tpu_custom_call.1} parent=5 // pred_region
        %s187 = ssub.s32 %s14, 1
        // Predicated region
        $region13: #{tpu_custom_call.1} parent=11 // pred_check
          %p188 = pneg %p103
        $region14: #{tpu_custom_call.1} parent=11 // pred_check_branch
          %190 = sbr.rel (%p188) target = $region16
        $region15: #{tpu_custom_call.1} parent=11 // pred_region
          _
        $region16: #{tpu_custom_call.1} parent=11 // pred_fallthru
          _
        // Predicated region
        $region17: #{tpu_custom_call.1} parent=11 // pred_check
          %p191 = pneg %p124
        $region18: #{tpu_custom_call.1} parent=11 // pred_check_branch
          %193 = sbr.rel (%p191) target = $region20
        $region19: #{tpu_custom_call.1} parent=11 // pred_region
          _
        $region20: #{tpu_custom_call.1} parent=11 // pred_fallthru
          _
        // Predicated region
        $region21: #{tpu_custom_call.1} parent=11 // pred_check
          %p194 = pneg %p145
        $region22: #{tpu_custom_call.1} parent=11 // pred_check_branch
          %196 = sbr.rel (%p194) target = $region24
        $region23: #{tpu_custom_call.1} parent=11 // pred_region
          _
        $region24: #{tpu_custom_call.1} parent=11 // pred_fallthru
          _
      $region12: #{tpu_custom_call.1} parent=5 // pred_fallthru
        _
      %p197 = scmp.lt.s32.totalorder %s14, 2
      // Predicated region
      $region25: #{tpu_custom_call.1} parent=5 // pred_check
        %p198 = pneg %p197
      $region26: #{tpu_custom_call.1} parent=5 // pred_check_branch
        %200 = sbr.rel (%p198) target = $region28
      $region27: #{tpu_custom_call.1} parent=5 // pred_region
        // Predicated region
        $region29: #{tpu_custom_call.1} parent=27 // pred_check
          %p201 = pneg %p48
        $region30: #{tpu_custom_call.1} parent=27 // pred_check_branch
          %203 = sbr.rel (%p201) target = $region32
        $region31: #{tpu_custom_call.1} parent=27 // pred_region
          %s204 = smul.u32 2, %s22
          %p205 = scmp.lt.s32.totalorder %s21, 1
          %s206 = scalar_select %p205, %s21, 1
          %p207 = scmp.lt.s32.totalorder %s204, 1
          %s208 = scalar_select %p207, %s204, 1
          %s209 = smul.addr %s206, 2
          %s210 = sadd.s32 %s208, %s209
          %s211 = smul.addr %s210, 4
          %s212 = scalar_lea.vmem %s0, %s211
          %s213 = smul.u32 2, %s22
        $region32: #{tpu_custom_call.1} parent=27 // pred_fallthru
          _
        // Predicated region
        $region33: #{tpu_custom_call.1} parent=27 // pred_check
          %p214 = pneg %p76
        $region34: #{tpu_custom_call.1} parent=27 // pred_check_branch
          %216 = sbr.rel (%p214) target = $region36
        $region35: #{tpu_custom_call.1} parent=27 // pred_region
          %s217 = smul.u32 2, %s22
          %p218 = scmp.lt.s32.totalorder %s21, 1
          %s219 = scalar_select %p218, %s21, 1
          %p220 = scmp.lt.s32.totalorder %s217, 1
          %s221 = scalar_select %p220, %s217, 1
          %s222 = smul.addr %s219, 2
          %s223 = sadd.s32 %s221, %s222
          %s224 = smul.addr %s223, 4
          %s225 = scalar_lea.vmem %s1, %s224
          %s226 = smul.u32 2, %s22
        $region36: #{tpu_custom_call.1} parent=27 // pred_fallthru
          _
      $region28: #{tpu_custom_call.1} parent=5 // pred_fallthru
        _
      %p227 = scmp.le.s32.totalorder 1, %s14
      %p228 = scmp.lt.s32.totalorder %s14, 3
      %p229 = pnand %p227, %p228
      %p230 = pneg %p229
      // Predicated region
      $region37: #{tpu_custom_call.1} parent=5 // pred_check
        _
      $region38: #{tpu_custom_call.1} parent=5 // pred_check_branch
        %232 = sbr.rel (%p229) target = $region40
      $region39: #{tpu_custom_call.1} parent=5 // pred_region
        %s233 = ssub.s32 %s14, 1
        %s234 = smul.u32 2, %s24
        %p235 = scmp.lt.s32.totalorder %s23, 1
        %s236 = scalar_select %p235, %s23, 1
        %p237 = scmp.lt.s32.totalorder %s234, 1
        %s238 = scalar_select %p237, %s234, 1
        %s239 = smul.addr %s236, 2
        %s240 = sadd.s32 %s238, %s239
        %s241 = smul.addr %s240, 4
        %s242 = scalar_lea.vmem %s0, %s241
        %p243 = pneg %p54
        %p244 = pneg %p51
        %s245 = smul.u32 2, %s24
        %p246 = scmp.lt.s32.totalorder %s23, 1
        %s247 = scalar_select %p246, %s23, 1
        %p248 = scmp.lt.s32.totalorder %s245, 1
        %s249 = scalar_select %p248, %s245, 1
        %s250 = smul.addr %s247, 2
        %s251 = sadd.s32 %s249, %s250
        %s252 = smul.addr %s251, 4
        %s253 = scalar_lea.vmem %s1, %s252
        %p254 = pneg %p82
        %p255 = pneg %p79
        %p256 = pneg %p103
        %p257 = pneg %p100
        %p258 = pneg %p124
        %p259 = pneg %p121
        %p260 = pneg %p145
        %p261 = pneg %p142
        %p262 = pneg %p173
        %p263 = pneg %p170
        %s264 = sand.u32 %s160, 1
        %s265 = scalar_lea.sflag [#allocation3], %s264
        %s266 = sand.u32 %s160, 1
        %s267 = smul.addr %s266, 8
        %s268 = scalar_lea.vmem [#allocation2], %s267
        %s269 = smul.u32 2, %s24
        %p270 = scmp.lt.s32.totalorder %s23, 1
        %s271 = scalar_select %p270, %s23, 1
        %p272 = scmp.lt.s32.totalorder %s269, 1
        %s273 = scalar_select %p272, %s269, 1
        %s274 = smul.addr %s271, 2
        %s275 = sadd.s32 %s273, %s274
        %s276 = smul.addr %s275, 4
        %s277 = scalar_lea.vmem %s0, %s276
        %s278 = smul.u32 2, %s24
        %s279 = smul.u32 2, %s24
        %p280 = scmp.lt.s32.totalorder %s23, 1
        %s281 = scalar_select %p280, %s23, 1
        %p282 = scmp.lt.s32.totalorder %s279, 1
        %s283 = scalar_select %p282, %s279, 1
        %s284 = smul.addr %s281, 2
        %s285 = sadd.s32 %s283, %s284
        %s286 = smul.addr %s285, 4
        %s287 = scalar_lea.vmem %s1, %s286
        %s288 = smul.u32 2, %s24
        %s289 = smul.u32 2, %s24
        %v290 = vld [vmem:[%s4] sm:$0xff]
        %v291 = vld [vmem:[%s2] sm:$0xff]
        %v292 = vld [vmem:[%s277] sm:$0xff]
        %v293 = vld [vmem:[%s3] sm:$0xff]
        %v294 = vld [vmem:[%s287] sm:$0xff]
        %v296 = vcombine.high %v294, %v294
        %vm297 = vcmask 31744
        %v299 = vsel %vm297, %v293, 0
        %vm301 = vcmask 1043456
        %v302 = vsel %vm301, %v294, 0
        %v304 = vsel %vm301, %v296, 0
        %306 = vmatprep.subr.mxu0 %v304
        %307 = vmatpush1.msra.mxu0 %v302
        %308 = vmatprep.subr.mxu0 0.0
        %309 = vmatpush1.msra.mxu0 0.0
        %310 = vmatprep.subr.mxu0 0.0
        %311 = vmatpush1.msra.mxu0 0.0
        %312 = vmatprep.subr.mxu0 0.0
        %313 = vmatpush1.msra.mxu0 0.0
        %314 = vmatprep.subr.mxu0 0.0
        %315 = vmatpush1.msra.mxu0 0.0
        %316 = vmatprep.subr.mxu0 0.0
        %317 = vmatpush1.msra.mxu0 0.0
        %318 = vmatprep.subr.mxu0 0.0
        %319 = vmatpush1.msra.mxu0 0.0
        %320 = vmatprep.subr.mxu0 0.0
        %321 = vmatpush1.msra.mxu0 0.0
        %322 = vmatprep.subr.mxu0 0.0
        %323 = vmatpush1.msra.mxu0 0.0
        %324 = vmatprep.subr.mxu0 0.0
        %325 = vmatpush1.msra.mxu0 0.0
        %326 = vmatprep.subr.mxu0 0.0
        %327 = vmatpush1.msra.mxu0 0.0
        %328 = vmatprep.subr.mxu0 0.0
        %329 = vmatpush1.msra.mxu0 0.0
        %330 = vmatprep.subr.mxu0 0.0
        %331 = vmatpush1.msra.mxu0 0.0
        %332 = vmatprep.subr.mxu0 0.0
        %333 = vmatpush1.msra.mxu0 0.0
        %334 = vmatprep.subr.mxu0 0.0
        %335 = vmatpush1.msra.mxu0 0.0
        %336 = vmatprep.subr.mxu0 0.0
        %337 = vmatpush1.msra.mxu0 0.0
        %338 = vmatprep.subr.mxu0 0.0
        %339 = vmatpush1.msra.mxu0 0.0
        %340 = vmatprep.subr.mxu0 0.0
        %341 = vmatpush1.msra.mxu0 0.0
        %342 = vmatprep.subr.mxu0 0.0
        %343 = vmatpush1.msra.mxu0 0.0
        %344 = vmatprep.subr.mxu0 0.0
        %345 = vmatpush1.msra.mxu0 0.0
        %346 = vmatprep.subr.mxu0 0.0
        %347 = vmatpush1.msra.mxu0 0.0
        %348 = vmatprep.subr.mxu0 0.0
        %349 = vmatpush1.msra.mxu0 0.0
        %350 = vmatprep.subr.mxu0 0.0
        %351 = vmatpush1.msra.mxu0 0.0
        %352 = vmatprep.subr.mxu0 0.0
        %353 = vmatpush1.msra.mxu0 0.0
        %354 = vmatprep.subr.mxu0 0.0
        %355 = vmatpush1.msra.mxu0 0.0
        %356 = vmatprep.subr.mxu0 0.0
        %357 = vmatpush1.msra.mxu0 0.0
        %358 = vmatprep.subr.mxu0 0.0
        %359 = vmatpush1.msra.mxu0 0.0
        %360 = vmatprep.subr.mxu0 0.0
        %361 = vmatpush1.msra.mxu0 0.0
        %362 = vmatprep.subr.mxu0 0.0
        %363 = vmatpush1.msra.mxu0 0.0
        %364 = vmatprep.subr.mxu0 0.0
        %365 = vmatpush1.msra.mxu0 0.0
        %366 = vmatprep.subr.mxu0 0.0
        %367 = vmatpush1.msra.mxu0 0.0
        %368 = vmatprep.subr.mxu0 0.0
        %369 = vmatpush1.msra.mxu0 0.0
        %370 = vmatprep.mubr.f32.mxu0 0.0
        %371 = vmatmul.mubr.f32.gmra.mrb[0].mxu0 %v299
        %v372 = vpop.f32.mrb[0].mxu0
        %v373 = vadd.f32 0.0, %v372
        %v374 = vpop.f32.mrb[0].mxu0
        %v375 = vadd.f32 0.0, %v374
        %376 = vdwg.mxu0
        %v378 = vcombine.high %v292, %v292
        %v380 = vsel %vm297, %v291, 0
        %v382 = vsel %vm301, %v292, 0
        %v384 = vsel %vm301, %v378, 0
        %386 = vmatprep.subr.mxu0 %v384
        %387 = vmatpush1.msra.mxu0 %v382
        %388 = vmatprep.subr.mxu0 0.0
        %389 = vmatpush1.msra.mxu0 0.0
        %390 = vmatprep.subr.mxu0 0.0
        %391 = vmatpush1.msra.mxu0 0.0
        %392 = vmatprep.subr.mxu0 0.0
        %393 = vmatpush1.msra.mxu0 0.0
        %394 = vmatprep.subr.mxu0 0.0
        %395 = vmatpush1.msra.mxu0 0.0
        %396 = vmatprep.subr.mxu0 0.0
        %397 = vmatpush1.msra.mxu0 0.0
        %398 = vmatprep.subr.mxu0 0.0
        %399 = vmatpush1.msra.mxu0 0.0
        %400 = vmatprep.subr.mxu0 0.0
        %401 = vmatpush1.msra.mxu0 0.0
        %402 = vmatprep.subr.mxu0 0.0
        %403 = vmatpush1.msra.mxu0 0.0
        %404 = vmatprep.subr.mxu0 0.0
        %405 = vmatpush1.msra.mxu0 0.0
        %406 = vmatprep.subr.mxu0 0.0
        %407 = vmatpush1.msra.mxu0 0.0
        %408 = vmatprep.subr.mxu0 0.0
        %409 = vmatpush1.msra.mxu0 0.0
        %410 = vmatprep.subr.mxu0 0.0
        %411 = vmatpush1.msra.mxu0 0.0
        %412 = vmatprep.subr.mxu0 0.0
        %413 = vmatpush1.msra.mxu0 0.0
        %414 = vmatprep.subr.mxu0 0.0
        %415 = vmatpush1.msra.mxu0 0.0
        %416 = vmatprep.subr.mxu0 0.0
        %417 = vmatpush1.msra.mxu0 0.0
        %418 = vmatprep.subr.mxu0 0.0
        %419 = vmatpush1.msra.mxu0 0.0
        %420 = vmatprep.subr.mxu0 0.0
        %421 = vmatpush1.msra.mxu0 0.0
        %422 = vmatprep.subr.mxu0 0.0
        %423 = vmatpush1.msra.mxu0 0.0
        %424 = vmatprep.subr.mxu0 0.0
        %425 = vmatpush1.msra.mxu0 0.0
        %426 = vmatprep.subr.mxu0 0.0
        %427 = vmatpush1.msra.mxu0 0.0
        %428 = vmatprep.subr.mxu0 0.0
        %429 = vmatpush1.msra.mxu0 0.0
        %430 = vmatprep.subr.mxu0 0.0
        %431 = vmatpush1.msra.mxu0 0.0
        %432 = vmatprep.subr.mxu0 0.0
        %433 = vmatpush1.msra.mxu0 0.0
        %434 = vmatprep.subr.mxu0 0.0
        %435 = vmatpush1.msra.mxu0 0.0
        %436 = vmatprep.subr.mxu0 0.0
        %437 = vmatpush1.msra.mxu0 0.0
        %438 = vmatprep.subr.mxu0 0.0
        %439 = vmatpush1.msra.mxu0 0.0
        %440 = vmatprep.subr.mxu0 0.0
        %441 = vmatpush1.msra.mxu0 0.0
        %442 = vmatprep.subr.mxu0 0.0
        %443 = vmatpush1.msra.mxu0 0.0
        %444 = vmatprep.subr.mxu0 0.0
        %445 = vmatpush1.msra.mxu0 0.0
        %446 = vmatprep.subr.mxu0 0.0
        %447 = vmatpush1.msra.mxu0 0.0
        %448 = vmatprep.subr.mxu0 0.0
        %449 = vmatpush1.msra.mxu0 0.0
        %450 = vmatprep.mubr.f32.mxu0 0.0
        %451 = vmatmul.mubr.f32.gmra.mrb[0].mxu0 %v380
        %v452 = vpop.f32.mrb[0].mxu0
        %v453 = vadd.f32 %v373, %v452
        %v454 = vpop.f32.mrb[0].mxu0
        %v455 = vadd.f32 %v375, %v454
        %456 = vdwg.mxu0
        %458 = vset.pattern.permute.xlu0 0
        %459 = vperm.xlu0 %458, %v290
        %v460 = vpop.permute.xlu0 %459
        %v462 = vadd.f32 %v453, %v460
        %v463 = vadd.f32 %v455, %v460
        %v464 = vmax.f32 %v462, 0.0
        %v465 = vmax.f32 %v463, 0.0
        %466 = vset.pattern.permute.xlu0 1
        %467 = vperm.xlu0 %466, %v290
        %v468 = vpop.permute.xlu0 %467
        %v470 = vmul.f32 %v464, %v468
        %v471 = vmul.f32 %v465, %v468
        %v472 = vrot.slane %v470, 4
        %v473 = vadd.f32 %v470, %v472
        %v474 = vrot.slane %v473, 2
        %v475 = vadd.f32 %v473, %v474
        %v476 = vrot.slane %v475, 1
        %v477 = vadd.f32 %v475, %v476
        %v478 = vrot.slane %v471, 4
        %v479 = vadd.f32 %v471, %v478
        %v480 = vrot.slane %v479, 2
        %v481 = vadd.f32 %v479, %v480
        %v482 = vrot.slane %v481, 1
        %v483 = vadd.f32 %v481, %v482
        %484 = vset.pattern.permute.xlu0 2
        %485 = vperm.xlu0 %484, %v290
        %v486 = vpop.permute.xlu0 %485
        %v488 = vadd.f32 %v477, %v486
        %v489 = vadd.f32 %v483, %v486
        %v490 = vxor.u32 %v488, 2147483648
        %v491 = vxor.u32 %v489, 2147483648
        %v492 = vmul.f32 %v490, 1.442695
        %v493 = vpow.pop %v492
        %v494 = vmul.f32 %v491, 1.442695
        %v495 = vpow.pop %v494
        %v496 = vadd.f32 %v493, 1.0
        %v497 = vadd.f32 %v495, 1.0
        %v498 = vrcp.pop %v496
        %v499 = vmul.f32 1.0, %v498
        %v500 = vrcp.pop %v497
        %v501 = vmul.f32 1.0, %v500
        %v502 = vlaneseq
        %v503 = vshrl.u32 %v502, 7
        %v504 = vsub.s32 0, %v503
        %v505 = vrot.slane %v499, %v504
        %v506 = vlaneseq
        %v507 = vshrl.u32 %v506, 7
        %v508 = vsub.s32 0, %v507
        %v509 = vrot.slane %v501, %v508
        %v512 = vcombine.low %v505, %v509
        %v514 = vmul.f32 %v292, %v512
        %515 = vst [vmem:[%s268] sm:$0xff] %v514
        %s516 = sand.u32 %s160, 1
        %s517 = scalar_lea.sflag [#allocation3], %s516
        %s518 = sand.u32 %s160, 1
        %s519 = smul.addr %s518, 8
        %s520 = scalar_lea.vmem [#allocation2], %s519
        // Predicated region
        $region41: #{tpu_custom_call.1} parent=39 // pred_check
          %p521 = pneg %p170
        $region42: #{tpu_custom_call.1} parent=39 // pred_check_branch
          %523 = sbr.rel (%p521) target = $region44
        $region43: #{tpu_custom_call.1} parent=39 // pred_region
          %s524 = smul.u32 2, %s24
          %s526 = ssub.s32 128, 128
          %527 = vsyncadd %s517, %s526
          %s528 = smul.addr %s23, 2
          %s529 = sadd.s32 %s524, %s528
          %s530 = smul.addr %s529, 64
          %s531 = scalar_lea.hbm %s5, %s530
          %s533 = sshll.u32 %s520, 4
          %s534 = int_to_ptr.vmem [resolvable:$true] %s533
          %536 = dma.vmem_to_hbm [thread:$0]  %s534, 128, %s531, %s517
        $region44: #{tpu_custom_call.1} parent=39 // pred_fallthru
          _
      $region40: #{tpu_custom_call.1} parent=5 // pred_fallthru
        _
      %p537 = scmp.le.s32.totalorder 2, %s14
      // Predicated region
      $region45: #{tpu_custom_call.1} parent=5 // pred_check
        %p538 = pneg %p537
      $region46: #{tpu_custom_call.1} parent=5 // pred_check_branch
        %540 = sbr.rel (%p538) target = $region48
      $region47: #{tpu_custom_call.1} parent=5 // pred_region
        %s541 = ssub.s32 %s14, 2
        // Predicated region
        $region49: #{tpu_custom_call.1} parent=47 // pred_check
          %p542 = pneg %p176
        $region50: #{tpu_custom_call.1} parent=47 // pred_check_branch
          %544 = sbr.rel (%p542) target = $region52
        $region51: #{tpu_custom_call.1} parent=47 // pred_region
          %s545 = sand.u32 %s161, 1
          %s546 = scalar_lea.sflag [#allocation3], %s545
          %s547 = sand.u32 %s161, 1
          %s548 = smul.addr %s547, 8
          %s549 = scalar_lea.vmem [#allocation2], %s548
          %550 = dma.done %s546, 128
        $region52: #{tpu_custom_call.1} parent=47 // pred_fallthru
          _
      $region48: #{tpu_custom_call.1} parent=5 // pred_fallthru
        _
    $region6: #{tpu_custom_call.1} parent=1 // loop_footer
      %s18 = sadd.s32 1, %s14
    $region7: #{tpu_custom_call.1} parent=1 // loop_footer_branch
      %13 = sbr.rel target = $region3
    $region8: #{tpu_custom_call.1} parent=1 // loop_exit
      _
    %551 = vsyncpa [#allocation3], 1
    %s552 = scalar_lea.sflag [#allocation3], 1
    %553 = vsyncpa %s552, 1

</llo_original>
